<compile_context>
chip_gen: v5e
topology: v5e:2x2
jax: 0.10.0
libtpu: 0.0.40
codegen_flags: <defaults>
</compile_context>

<pallas_src>
import jax
import jax.numpy as jnp
from jax.experimental import pallas as pl
from jax.experimental.pallas import tpu as pltpu


def _cdiv(a, b):
    return -(-a // b)


# ---------------------------------------------------------------------------
# Kernels
# ---------------------------------------------------------------------------

def mlp_kernel_multi_k(x_ref, w_ref, b_ref, o_ref, acc_ref):
    """One (i, j, k) grid step of y = tanh(x @ W^T + b), K split across tiles.

    x_ref:   (tm, tk)            activation row/K tile
    w_ref:   (tk, tn)            weight tile, already transposed to (in, out)
    b_ref:   (1,  tn)            bias tile
    o_ref:   (tm, tn)            output tile (resident across the k axis)
    acc_ref: (tm, tn) f32 VMEM   accumulator scratch
    """
    k = pl.program_id(2)

    @pl.when(k == 0)
    def _():
        acc_ref[...] = jnp.zeros_like(acc_ref)

    # Plain (tm,tk)x(tk,tn) MXU matmul; the PyTorch [out,in] weight was
    # transposed once in the wrapper, so no in-loop transpose steals the
    # vector-extended (vxpose/vmatmul) slots.
    acc_ref[...] += jnp.dot(x_ref[...], w_ref[...],
                            preferred_element_type=jnp.float32)

    @pl.when(k == pl.num_programs(2) - 1)
    def _():
        y = acc_ref[...] + b_ref[...].astype(jnp.float32)   # f32 epilogue
        o_ref[...] = jnp.tanh(y).astype(o_ref.dtype)          # EUP tanh, one cast


def mlp_kernel_single_k(x_ref, w_ref, b_ref, o_ref):
    """Whole contraction fits in one K tile: no accumulator scratch at all."""
    y = jnp.dot(x_ref[...], w_ref[...], preferred_element_type=jnp.float32)
    y = y + b_ref[...].astype(jnp.float32)
    o_ref[...] = jnp.tanh(y).astype(o_ref.dtype)


# ---------------------------------------------------------------------------
# Tiling / budget heuristics
# ---------------------------------------------------------------------------

def _vmem_limit_bytes():
    """Generation-aware scoped-VMEM budget (~75% of physical, <= 110 MiB)."""
    try:
        cap = int(pltpu.get_tpu_info().vmem_capacity_bytes)
    except Exception:  # not on TPU / info unavailable: safe-on-all-gens default
        cap = 64 * 1024 * 1024
    return min(cap * 3 // 4, 110 * 1024 * 1024)


def _auto_tiles(batch_p, hidden, in_isz, w_isz, out_isz, b_isz, budget, packing):
    """Pick (tm, tn, tk): as large as the VMEM budget allows."""
    # Output-feature tile: lane-dense, as wide as divisibility allows.
    tn = next((c for c in (512, 256, 128) if hidden % c == 0), hidden)

    # Contraction tile: largest divisor of hidden whose double-buffered W tile
    # stays within ~1/3 of the budget.  Big tk amortizes per-step overhead,
    # cuts accumulator round-trips (single vst slot on v5e) and lets v7x keep
    # the running sum in the MRB.
    if hidden % 128 == 0:
        cands = [hidden] + [c for c in (2048, 1024, 512, 256, 128)
                            if hidden % c == 0]
        tk = next((c for c in cands if 2 * c * tn * w_isz <= budget // 3), 128)
    else:
        tk = hidden  # demo-sized / irregular hidden: full-dim block

    # Row tile: maximize under the remaining budget (tm == batch when it
    # fits); weight HBM traffic is |W| * ceil(B / tm).
    denom = 2 * tk * in_isz + 2 * tn * out_isz + tn * 4      # x db + out db + acc
    avail = budget - 2 * tk * tn * w_isz - 2 * tn * b_isz    # minus W db + bias db
    tm_max = max(packing, (avail // denom) // packing * packing)
    if tm_max >= batch_p:
        tm = batch_p
    else:
        n_steps = _cdiv(batch_p, tm_max)                     # minimize pad waste
        tm = _cdiv(_cdiv(batch_p, n_steps), packing) * packing
    return tm, tn, tk


# ---------------------------------------------------------------------------
# Wrapper
# ---------------------------------------------------------------------------

def mlp_layer(features, weight, bias, *, out_dtype=None, matmul_dtype=None,
              tiles=None):
    """features: [B, H]; weight: [H, H] PyTorch [out, in] layout; bias: [H]."""
    batch, hidden = features.shape
    assert weight.shape == (hidden, hidden) and bias.shape == (hidden,)
    out_dtype = jnp.dtype(out_dtype or features.dtype)

    if matmul_dtype is not None:
        # Optional reduced-precision MXU path (f32 accumulate + f32 epilogue
        # are kept in the kernel regardless).
        features = features.astype(matmul_dtype)
        weight = weight.astype(matmul_dtype)

    # One transpose of the persistent layer parameter to (in, out) layout so
    # the kernel uses the standard contraction with no in-loop vxpose.  Under
    # jit this is amortized / fused away; it is O(H^2) vs the O(B*H^2) matmul.
    w_t = weight.T
    bias2d = bias.reshape(1, hidden)

    in_isz = jnp.dtype(features.dtype).itemsize
    w_isz = jnp.dtype(w_t.dtype).itemsize
    b_isz = jnp.dtype(bias.dtype).itemsize
    out_isz = out_dtype.itemsize
    packing = {4: 8, 2: 16, 1: 32}.get(in_isz, 8)

    vmem_limit = _vmem_limit_bytes()
    budget = int(vmem_limit * 0.8)   # headroom for compiler-internal scratch

    if tiles is None:
        batch_p = _cdiv(batch, packing) * packing
        tm, tn, tk = _auto_tiles(batch_p, hidden, in_isz, w_isz, out_isz,
                                 b_isz, budget, packing)
    else:
        tm, tn, tk = tiles
    assert hidden % tn == 0 and hidden % tk == 0, "tiles must divide hidden"

    # Pad ragged batches instead of forcing a single huge row tile.
    batch_pad = _cdiv(batch, tm) * tm
    if batch_pad != batch:
        features = jnp.pad(features, ((0, batch_pad - batch), (0, 0)))

    grid = (batch_pad // tm, hidden // tn, hidden // tk)
    n_k = grid[2]

    cost = pl.CostEstimate(
        flops=2 * batch_pad * hidden * hidden,
        transcendentals=batch_pad * hidden,
        # Actual streamed traffic: x re-read once per output-column tile,
        # W re-read once per batch-row tile.
        bytes_accessed=(batch_pad * hidden * in_isz * grid[1]
                        + hidden * hidden * w_isz * grid[0]
                        + hidden * b_isz * grid[0]
                        + batch_pad * hidden * out_isz),
    )

    kernel = mlp_kernel_single_k if n_k == 1 else mlp_kernel_multi_k
    scratch = [] if n_k == 1 else [pltpu.VMEM((tm, tn), jnp.float32)]

    out = pl.pallas_call(
        kernel,
        out_shape=jax.ShapeDtypeStruct((batch_pad, hidden), out_dtype),
        grid_spec=pltpu.PrefetchScalarGridSpec(
            num_scalar_prefetch=0,
            grid=grid,
            in_specs=[
                pl.BlockSpec((tm, tk), lambda i, j, k: (i, k)),   # x tile
                pl.BlockSpec((tk, tn), lambda i, j, k: (k, j)),   # W^T tile
                pl.BlockSpec((1, tn), lambda i, j, k: (0, j)),    # bias tile
            ],
            out_specs=pl.BlockSpec((tm, tn), lambda i, j, k: (i, j)),
            scratch_shapes=scratch,
        ),
        compiler_params=pltpu.CompilerParams(
            # batch / out-feature axes are independent (megacore-shardable);
            # k is the contraction axis and must stay sequential.
            dimension_semantics=("parallel", "parallel", "arbitrary"),
            vmem_limit_bytes=vmem_limit,
        ),
        cost_estimate=cost,
    )(features, w_t, bias2d)

    if batch_pad != batch:
        out = out[:batch]
    return out


def mlp_layer_ref(features, weight, bias):
    y = jnp.tanh(features.astype(jnp.float32) @ weight.astype(jnp.float32).T
                 + bias.astype(jnp.float32))
    return y.astype(features.dtype)


if __name__ == "__main__":
    key = jax.random.PRNGKey(0)

    def make_case(k, batch, hidden, dtype=jnp.float32):
        k_x, k_w, k_b = jax.random.split(k, 3)
        x = jax.random.normal(k_x, (batch, hidden), dtype=jnp.float32)
        w = jax.random.normal(k_w, (hidden, hidden), dtype=jnp.float32) / hidden ** 0.5
        b = jax.random.normal(k_b, (hidden,), dtype=jnp.float32) * 0.1
        return x.astype(dtype), w.astype(dtype), b.astype(dtype)

    k1, k2, k3, k4 = jax.random.split(key, 4)

    def check(name, out, ref):
        assert out.shape == ref.shape, f"{name}: shape mismatch"
        assert jnp.allclose(out, ref, atol=2e-4, rtol=2e-4), f"{name}: mismatch"

    # 1) Small config matching the synthetic spec (config.hidden_size = 32).
    x, w, b = make_case(k1, batch=8, hidden=32)
    out = jax.block_until_ready(mlp_layer(x, w, b))
    check("8x32", out, mlp_layer_ref(x, w, b))

    # 2) Auto-tiled path: tn=tk=512, tm=B -> single K step, lane-dense 512-wide
    #    output tiles, no accumulator scratch, one weight pass.
    x, w, b = make_case(k2, batch=256, hidden=512)
    out = jax.block_until_ready(mlp_layer(x, w, b))
    check("256x512", out, mlp_layer_ref(x, w, b))

    # 3) Ragged batch: wrapper pads 100 -> 104 rows and slices the pad back off.
    x, w, b = make_case(k3, batch=100, hidden=256)
    out = jax.block_until_ready(mlp_layer(x, w, b))
    check("100x256 (ragged)", out, mlp_layer_ref(x, w, b))

    # 4) Forced small tiles to exercise the multi-step K-accumulation kernel
    #    (grid = (3, 3, 3), f32 VMEM accumulator, pl.when init / epilogue).
    x, w, b = make_case(k4, batch=192, hidden=384)
    out = jax.block_until_ready(mlp_layer(x, w, b, tiles=(64, 128, 128)))
    check("192x384 (multi-K)", out, mlp_layer_ref(x, w, b))

    print("KERNEL_OK")
</pallas_src>

<mosaic_0001>
module attributes {stable_mosaic.version = 11 : i64} {
  func.func @mlp_kernel_single_k(%arg0: i32, %arg1: i32, %arg2: i32, %arg3: memref<8x32xf32, #tpu.memory_space<vmem>>, %arg4: memref<32x32xf32, #tpu.memory_space<vmem>>, %arg5: memref<1x32xf32, #tpu.memory_space<vmem>>, %arg6: memref<8x32xf32, #tpu.memory_space<vmem>>) attributes {dimension_semantics = [#tpu.dimension_semantics<parallel>, #tpu.dimension_semantics<parallel>, #tpu.dimension_semantics<arbitrary>], iteration_bounds = array<i64: 1, 1, 1>, scalar_prefetch = 0 : i64, scratch_operands = 0 : i64, tpu.core_type = #tpu.core_type<tc>, window_params = [{transform_indices = @transform_0, window_bounds = array<i64: 8, 32>}, {transform_indices = @transform_1, window_bounds = array<i64: 32, 32>}, {transform_indices = @transform_2, window_bounds = array<i64: 1, 32>}, {transform_indices = @transform_3, window_bounds = array<i64: 8, 32>}]} {
    %c0 = arith.constant 0 : index
    %c0_0 = arith.constant 0 : index
    %0 = vector.load %arg3[%c0, %c0_0] : memref<8x32xf32, #tpu.memory_space<vmem>>, vector<8x32xf32>
    %c0_1 = arith.constant 0 : index
    %c0_2 = arith.constant 0 : index
    %1 = vector.load %arg4[%c0_1, %c0_2] : memref<32x32xf32, #tpu.memory_space<vmem>>, vector<32x32xf32>
    %cst = arith.constant dense<0.000000e+00> : vector<8x32xf32>
    %2 = tpu.matmul %0, %1, %cst {dimension_numbers = #tpu.dot_dimension_numbers<[1], [0], [0], [1], [0, 0, 1, 1], [], []>} : vector<8x32xf32>, vector<32x32xf32>, vector<8x32xf32> -> vector<8x32xf32>
    %c0_3 = arith.constant 0 : index
    %c0_4 = arith.constant 0 : index
    %3 = vector.load %arg5[%c0_3, %c0_4] : memref<1x32xf32, #tpu.memory_space<vmem>>, vector<1x32xf32>
    %4 = vector.broadcast %3 : vector<1x32xf32> to vector<8x32xf32>
    %5 = arith.addf %2, %4 : vector<8x32xf32>
    %6 = math.tanh %5 : vector<8x32xf32>
    %c0_5 = arith.constant 0 : index
    %c0_6 = arith.constant 0 : index
    %7 = vector.load %arg6[%c0_5, %c0_6] : memref<8x32xf32, #tpu.memory_space<vmem>>, vector<8x32xf32>
    tpu.vector_store %arg6[%c0_5, %c0_6], %6 {strides = array<i32>} : memref<8x32xf32, #tpu.memory_space<vmem>>, vector<8x32xf32>,
    return
  }
  func.func @transform_0(%arg0: i32, %arg1: i32, %arg2: i32) -> (i32, i32) {
    %c0_i32 = arith.constant 0 : i32
    return %arg0, %arg2 : i32, i32
  }
  func.func @transform_1(%arg0: i32, %arg1: i32, %arg2: i32) -> (i32, i32) {
    %c0_i32 = arith.constant 0 : i32
    return %arg2, %arg1 : i32, i32
  }
  func.func @transform_2(%arg0: i32, %arg1: i32, %arg2: i32) -> (i32, i32) {
    %c0_i32 = arith.constant 0 : i32
    %c0_i32_0 = arith.constant 0 : i32
    return %c0_i32, %arg1 : i32, i32
  }
  func.func @transform_3(%arg0: i32, %arg1: i32, %arg2: i32) -> (i32, i32) {
    %c0_i32 = arith.constant 0 : i32
    return %arg0, %arg1 : i32, i32
  }
}

</mosaic_0001>

<llo_original>
// kernel: tpu_custom_call.1
$region0: #{tpu_custom_call.1}
  #allocation0 [shape = 'u32[]', space=smem, size = 0x4, offset = 0x4, fixed_abs, tag = 'smem constant byte address 0x4 - core index']
  #allocation1 [shape = 'u32[72,128]{1,0:T(1,128)}', space=vmem, size = 0x9000, scoped, tag = 'internal scratch']
  %s0 = inlined_call_operand.hbm [shape: f32[8,32], index: 0, kind: input, shape index: {}]
  %s1 = inlined_call_operand.hbm [shape: f32[32,32], index: 1, kind: input, shape index: {}]
  %s2 = inlined_call_operand.vmem [shape: f32[1,32], index: 2, kind: input, shape index: {}]
  %s3 = inlined_call_operand.hbm [shape: f32[8,32], index: 3, kind: output, shape index: {}]
  %s4 = sld [smem:[#allocation0]]
  $region30: #{tpu_custom_call.1} parent=0
    _
  %s6 = ssub.s32 1, %s4
  %s7 = scalar_select 0, %s6, %s4
  $region1: #{tpu_custom_call.1} parent=0
    #allocation2 [shape = 'u8[4096]{0}', space=vmem, size = 0x1000, scoped, tag = 'input window, operand 0, single buffered']
    #allocation3 [shape = 's32[1]{0}', space=sflag, size = 0x4, scoped, tag = 'scoped memory for tpu_custom_call.1']
    #allocation4 [shape = 's32[1]{0}', space=sflag, size = 0x4, scoped, tag = 'scoped memory for tpu_custom_call.1']
    #allocation5 [shape = 'u8[16384]{0}', space=vmem, size = 0x4000, scoped, tag = 'input window, operand 1, single buffered']
    #allocation6 [shape = 's32[1]{0}', space=sflag, size = 0x4, scoped, tag = 'scoped memory for tpu_custom_call.1']
    #allocation7 [shape = 'u8[4096]{0}', space=vmem, size = 0x1000, scoped, tag = 'output window, operand 0, single buffered']
    %8 = vsyncpa [#allocation3], 0
    %9 = vsyncpa [#allocation6], 0
    %10 = vsyncpa [#allocation4], 0
    // Predicated region
    $region2: #{tpu_custom_call.1} parent=1 // pred_check
      _
    $region3: #{tpu_custom_call.1} parent=1 // pred_check_branch
      %12 = sbr.rel (0) target = $region5
    $region4: #{tpu_custom_call.1} parent=1 // pred_region
      %14 = vsyncadd [#allocation3], 0
      %s16 = sshll.u32 %s0, 4
      %s17 = int_to_ptr.hbm [resolvable:$true] %s16
      %s18 = sshll.u32 [#allocation2], 4
      %s19 = int_to_ptr.vmem [resolvable:$true] %s18
      %21 = dma.hbm_to_vmem [thread:$0]  %s17, 128, %s19, [#allocation3]
    $region5: #{tpu_custom_call.1} parent=1 // pred_fallthru
      _
    // Predicated region
    $region6: #{tpu_custom_call.1} parent=1 // pred_check
      _
    $region7: #{tpu_custom_call.1} parent=1 // pred_check_branch
      %23 = sbr.rel (0) target = $region9
    $region8: #{tpu_custom_call.1} parent=1 // pred_region
      %25 = vsyncadd [#allocation6], 0
      %s26 = sshll.u32 %s1, 4
      %s27 = int_to_ptr.hbm [resolvable:$true] %s26
      %s28 = sshll.u32 [#allocation5], 4
      %s29 = int_to_ptr.vmem [resolvable:$true] %s28
      %34 = dma.hbm_to_vmem [thread:$0]  %s27, 512, %s29, [#allocation6], 128, 128, 8
    $region9: #{tpu_custom_call.1} parent=1 // pred_fallthru
      _
    // Predicated region
    $region10: #{tpu_custom_call.1} parent=1 // pred_check
      _
    $region11: #{tpu_custom_call.1} parent=1 // pred_check_branch
      %36 = sbr.rel (0) target = $region13
    $region12: #{tpu_custom_call.1} parent=1 // pred_region
      _
    $region13: #{tpu_custom_call.1} parent=1 // pred_fallthru
      _
    // Predicated region
    $region14: #{tpu_custom_call.1} parent=1 // pred_check
      _
    $region15: #{tpu_custom_call.1} parent=1 // pred_check_branch
      %38 = sbr.rel (0) target = $region17
    $region16: #{tpu_custom_call.1} parent=1 // pred_region
      %40 = dma.done [#allocation3], 128
    $region17: #{tpu_custom_call.1} parent=1 // pred_fallthru
      _
    // Predicated region
    $region18: #{tpu_custom_call.1} parent=1 // pred_check
      _
    $region19: #{tpu_custom_call.1} parent=1 // pred_check_branch
      %42 = sbr.rel (0) target = $region21
    $region20: #{tpu_custom_call.1} parent=1 // pred_region
      %44 = dma.done [#allocation6], 512
    $region21: #{tpu_custom_call.1} parent=1 // pred_fallthru
      _
    %v45 = vld [vmem:[#allocation2] sm:$0xff]
    %v46 = vld [vmem:[#allocation5] sm:$0xff]
    %v47 = vld [vmem:[#allocation5 + $0x8] sm:$0xff]
    %v48 = vld [vmem:[#allocation5 + $0x10] sm:$0xff]
    %v49 = vld [vmem:[#allocation5 + $0x18] sm:$0xff]
    %v50 = vld [vmem:[%s2] sm:$0x1]
    %v52 = vperm.slane %v50, 0
    %vm54 = vcmask 261120
    %v56 = vsel %vm54, %v45, 0
    %58 = vmatpush.msra.mxu0 0.0
    %59 = vmatpush.msra.mxu0 0.0
    %60 = vmatpush.msra.mxu0 0.0
    %61 = vmatpush.msra.mxu0 0.0
    %62 = vmatpush.msra.mxu0 0.0
    %63 = vmatpush.msra.mxu0 0.0
    %64 = vmatpush.msra.mxu0 0.0
    %65 = vmatpush.msra.mxu0 0.0
    %66 = vmatpush.msra.mxu0 0.0
    %67 = vmatpush.msra.mxu0 0.0
    %68 = vmatpush.msra.mxu0 0.0
    %69 = vmatpush.msra.mxu0 0.0
    %70 = vmatpush.msra.mxu0 %v49
    %71 = vmatpush.msra.mxu0 %v48
    %72 = vmatpush.msra.mxu0 %v47
    %73 = vmatpush.msra.mxu0 %v46
    %74 = vmatmul.f32.gmra.mxu0 %v56
    %v75 = vpop.f32.mrf.mxu0
    %v76 = vadd.f32 %v52, %v75
    %77 = vdwg.mxu0
    %v78 = vtanh.pop %v76
    %79 = vst.msk [vmem:[#allocation7] sm:$0xff] %vm54, %v78
    // Predicated region
    $region22: #{tpu_custom_call.1} parent=1 // pred_check
      _
    $region23: #{tpu_custom_call.1} parent=1 // pred_check_branch
      %81 = sbr.rel (0) target = $region25
    $region24: #{tpu_custom_call.1} parent=1 // pred_region
      %83 = vsyncadd [#allocation4], 0
      %s85 = sshll.u32 [#allocation7], 4
      %s86 = int_to_ptr.vmem [resolvable:$true] %s85
      %s87 = sshll.u32 %s3, 4
      %s88 = int_to_ptr.hbm [resolvable:$true] %s87
      %90 = dma.vmem_to_hbm [thread:$0]  %s86, 128, %s88, [#allocation4]
    $region25: #{tpu_custom_call.1} parent=1 // pred_fallthru
      _
    // Predicated region
    $region26: #{tpu_custom_call.1} parent=1 // pred_check
      _
    $region27: #{tpu_custom_call.1} parent=1 // pred_check_branch
      %92 = sbr.rel (0) target = $region29
    $region28: #{tpu_custom_call.1} parent=1 // pred_region
      %94 = dma.done [#allocation4], 128
    $region29: #{tpu_custom_call.1} parent=1 // pred_fallthru
      _
    %95 = vsyncpa [#allocation3], 1
    %96 = vsyncpa [#allocation6], 1
    %97 = vsyncpa [#allocation4], 1

</llo_original>
